<compile_context>
chip_gen: v5e
topology: v5e:2x2
jax: 0.10.0
libtpu: 0.0.40
codegen_flags: <defaults>
</compile_context>

<pallas_src>
import functools

import jax
import jax.numpy as jnp
import numpy as np
from jax.experimental import pallas as pl
from jax.experimental.pallas import tpu as pltpu

LANE = 128  # lane width; output padded to a multiple of this


def _fused_kernel(v_ref, emb_ref, w_v_ref, b_v_ref, w_t_ref, b_t_ref,
                  w_cls_ref, b_cls_ref, o_ref, vacc_ref, *, inv_thw, dv):
    """Fused SlowViT forward.  grid = (B, num_spatial_tiles).

      v_ref    : (1, C, TILE)   streamed video tile (reduction axis = grid ax 1)
      emb_ref  : (1, S, E)      embedded text tokens (block constant in k)
      o_ref    : (1, 1, PAD)    lane-dense padded logits, written on last step
      vacc_ref : (1, C, TILE)   f32 partial-sum accumulator (VMEM scratch)
    """
    k = pl.program_id(1)

    # --- streaming phase: elementwise partial sums on the VPU ---------------
    @pl.when(k == 0)
    def _init():
        vacc_ref[...] = jnp.zeros_like(vacc_ref)

    vacc_ref[...] += v_ref[...].astype(jnp.float32)   # f32 accumulation

    # --- epilogue: single lane reduction, projections, fused classifier -----
    @pl.when(k == pl.num_programs(1) - 1)
    def _epilogue():
        # One cross-lane (XLU) reduction for the whole video slab.
        pooled_v = jnp.sum(vacc_ref[...], axis=-1) * inv_thw            # (1, C)
        # NOTE: at these toy dims the dots are far below MXU tile size; at
        # real model dims they become proper MXU tiles.
        vf = jnp.dot(pooled_v, w_v_ref[...],
                     preferred_element_type=jnp.float32) + b_v_ref[...]  # (1, Dv)

        pooled_t = jnp.mean(emb_ref[...].astype(jnp.float32), axis=1)    # (1, E)
        tf = jnp.dot(pooled_t, w_t_ref[...],
                     preferred_element_type=jnp.float32) + b_t_ref[...]  # (1, Dt)

        # cat([vf, tf], -1) @ W  ==  vf @ W[:Dv] + tf @ W[Dv:]
        # (static ref-view split; dv is a multiple of 8, so sublane-aligned)
        logits = jnp.dot(vf, w_cls_ref[:dv, :],
                         preferred_element_type=jnp.float32)
        logits += jnp.dot(tf, w_cls_ref[dv:, :],
                          preferred_element_type=jnp.float32)
        o_ref[0] = logits + b_cls_ref[...]                               # (1, PAD)


def slow_vit_forward(video, text_ids, params, *, tile=256):
    """video (B, C, T, H, W) f32, text_ids (B, S) i32 -> logits (B, num_classes)."""
    B, C, T, H, W = video.shape
    thw = T * H * W
    S = text_ids.shape[1]

    # Flatten so the pooled axis is the lane-friendly last axis; pad it to a
    # multiple of the tile (padded zeros do not change the running sum).
    v = video.reshape(B, C, thw)
    pad_sp = (-thw) % tile
    if pad_sp:
        v = jnp.pad(v, ((0, 0), (0, 0), (0, pad_sp)))
    nk = v.shape[-1] // tile

    # TODO(synk): for a real BERT path, stream embedding rows straight into the
    # fused kernel via PrefetchScalarGridSpec instead of this glue gather.
    emb = jnp.take(params["embed"], text_ids, axis=0)                    # (B, S, E)
    E = emb.shape[-1]

    w_v, b_v = params["w_v"], params["b_v"]
    w_t, b_t = params["w_t"], params["b_t"]
    w_cls, b_cls = params["w_cls"], params["b_cls"]
    dv = w_v.shape[1]
    hidden, num_classes = w_cls.shape

    # Lane-dense output: zero-pad num_classes up to a multiple of 128 lanes.
    pad_n = (-num_classes) % LANE
    npad = num_classes + pad_n
    w_cls_p = jnp.pad(w_cls, ((0, 0), (0, pad_n)))
    b_cls_p = jnp.pad(b_cls, ((0, 0), (0, pad_n)))

    flops = 2 * B * (C * thw + C * dv + S * E + E * w_t.shape[1] + hidden * npad)
    bytes_accessed = 4 * (v.size + emb.size + w_v.size + w_t.size
                          + w_cls_p.size + B * npad)

    out = pl.pallas_call(
        functools.partial(_fused_kernel, inv_thw=1.0 / float(thw), dv=dv),
        grid_spec=pltpu.PrefetchScalarGridSpec(
            num_scalar_prefetch=0,
            grid=(B, nk),                         # batch parallel, reduction last
            in_specs=[
                pl.BlockSpec((1, C, tile), lambda b, k: (b, 0, k)),   # video tiles
                pl.BlockSpec((1, S, E), lambda b, k: (b, 0, 0)),      # text emb
                pl.BlockSpec(w_v.shape, lambda b, k: (0, 0)),
                pl.BlockSpec(b_v.shape, lambda b, k: (0, 0)),
                pl.BlockSpec(w_t.shape, lambda b, k: (0, 0)),
                pl.BlockSpec(b_t.shape, lambda b, k: (0, 0)),
                pl.BlockSpec(w_cls_p.shape, lambda b, k: (0, 0)),
                pl.BlockSpec(b_cls_p.shape, lambda b, k: (0, 0)),
            ],
            out_specs=pl.BlockSpec((1, 1, npad), lambda b, k: (b, 0, 0)),
            scratch_shapes=[pltpu.VMEM((1, C, tile), jnp.float32)],
        ),
        out_shape=jax.ShapeDtypeStruct((B, 1, npad), jnp.float32),
        compiler_params=pltpu.CompilerParams(
            dimension_semantics=("parallel", "arbitrary"),
            vmem_limit_bytes=32 * 1024 * 1024,    # safe on v7x (64 MiB physical)
        ),
        cost_estimate=pl.CostEstimate(
            flops=int(flops), transcendentals=0,
            bytes_accessed=int(bytes_accessed)),
    )(v, emb, w_v, b_v, w_t, b_t, w_cls_p, b_cls_p)

    return out.reshape(B, npad)[:, :num_classes]


# ----------------------------------- main ------------------------------------

if __name__ == "__main__":
    # Small, forward-consistent shapes (video is NCTHW like PyTorch).
    B, C, T, H, W = 2, 4, 4, 16, 16
    S, VOCAB, E = 8, 16, 32
    DV, DT = 16, 16
    HIDDEN = DV + DT                 # bert_model.config.hidden_size == Dv + Dt
    NUM_CLASSES = 8

    key = jax.random.PRNGKey(0)
    keys = jax.random.split(key, 8)

    video = jax.random.normal(keys[0], (B, C, T, H, W), dtype=jnp.float32)
    text_ids = jax.random.randint(keys[1], (B, S), 0, VOCAB, dtype=jnp.int32)

    params = {
        # slowfast stub
        "w_v": jax.random.normal(keys[2], (C, DV), dtype=jnp.float32) * 0.1,
        "b_v": jax.random.normal(keys[3], (1, DV), dtype=jnp.float32) * 0.1,
        # bert stub
        "embed": jax.random.normal(keys[4], (VOCAB, E), dtype=jnp.float32) * 0.1,
        "w_t": jax.random.normal(keys[5], (E, DT), dtype=jnp.float32) * 0.1,
        "b_t": jnp.zeros((1, DT), dtype=jnp.float32),
        # classifier: Linear(hidden_size, num_classes), weight stored (HIDDEN, NC)
        "w_cls": jax.random.normal(keys[6], (HIDDEN, NUM_CLASSES), dtype=jnp.float32) * 0.1,
        "b_cls": jax.random.normal(keys[7], (1, NUM_CLASSES), dtype=jnp.float32) * 0.1,
    }

    out = jax.block_until_ready(slow_vit_forward(video, text_ids, params))
    assert out.shape == (B, NUM_CLASSES) and out.dtype == jnp.float32

    # Pure-JAX reference (mirrors the PyTorch forward semantics).
    vf_ref = video.reshape(B, C, -1).mean(-1) @ params["w_v"] + params["b_v"]
    tf_ref = (jnp.take(params["embed"], text_ids, axis=0).mean(1) @ params["w_t"]
              + params["b_t"])
    combined = jnp.concatenate([vf_ref, tf_ref], axis=-1)
    ref = combined @ params["w_cls"] + params["b_cls"]
    np.testing.assert_allclose(np.asarray(out), np.asarray(ref), atol=1e-4, rtol=1e-4)

    print("KERNEL_OK")
</pallas_src>

<mosaic_0001>
module attributes {stable_mosaic.version = 11 : i64} {
  func.func @_fused_kernel(%arg0: i32, %arg1: i32, %arg2: memref<1x4x256xf32, #tpu.memory_space<vmem>>, %arg3: memref<1x8x32xf32, #tpu.memory_space<vmem>>, %arg4: memref<4x16xf32, #tpu.memory_space<vmem>>, %arg5: memref<1x16xf32, #tpu.memory_space<vmem>>, %arg6: memref<32x16xf32, #tpu.memory_space<vmem>>, %arg7: memref<1x16xf32, #tpu.memory_space<vmem>>, %arg8: memref<32x128xf32, #tpu.memory_space<vmem>>, %arg9: memref<1x128xf32, #tpu.memory_space<vmem>>, %arg10: memref<1x1x128xf32, #tpu.memory_space<vmem>>, %arg11: memref<1x4x256xf32, #tpu.memory_space<vmem>>) attributes {dimension_semantics = [#tpu.dimension_semantics<parallel>, #tpu.dimension_semantics<arbitrary>], iteration_bounds = array<i64: 2, 4>, scalar_prefetch = 0 : i64, scratch_operands = 1 : i64, tpu.core_type = #tpu.core_type<tc>, window_params = [{transform_indices = @transform_0, window_bounds = array<i64: 1, 4, 256>}, {transform_indices = @transform_1, window_bounds = array<i64: 1, 8, 32>}, {pipeline_mode = #tpu.pipeline_mode<synchronous>, transform_indices = @transform_2, window_bounds = array<i64: 4, 16>}, {pipeline_mode = #tpu.pipeline_mode<synchronous>, transform_indices = @transform_3, window_bounds = array<i64: 1, 16>}, {pipeline_mode = #tpu.pipeline_mode<synchronous>, transform_indices = @transform_4, window_bounds = array<i64: 32, 16>}, {pipeline_mode = #tpu.pipeline_mode<synchronous>, transform_indices = @transform_5, window_bounds = array<i64: 1, 16>}, {pipeline_mode = #tpu.pipeline_mode<synchronous>, transform_indices = @transform_6, window_bounds = array<i64: 32, 128>}, {pipeline_mode = #tpu.pipeline_mode<synchronous>, transform_indices = @transform_7, window_bounds = array<i64: 1, 128>}, {transform_indices = @transform_8, window_bounds = array<i64: 1, 1, 128>}]} {
    %c0_i32 = arith.constant 0 : i32
    %0 = arith.cmpi eq, %arg1, %c0_i32 : i32
    %1 = arith.extui %0 : i1 to i32
    %c0_i32_0 = arith.constant 0 : i32
    %2 = arith.cmpi ne, %1, %c0_i32_0 : i32
    scf.if %2 {
      %cst = arith.constant 0.000000e+00 : f32
      %10 = vector.broadcast %cst : f32 to vector<1x4x256xf32>
      %c0_10 = arith.constant 0 : index
      %c0_11 = arith.constant 0 : index
      %c0_12 = arith.constant 0 : index
      %11 = vector.load %arg11[%c0_10, %c0_11, %c0_12] : memref<1x4x256xf32, #tpu.memory_space<vmem>>, vector<1x4x256xf32>
      tpu.vector_store %arg11[%c0_10, %c0_11, %c0_12], %10 {strides = array<i32>} : memref<1x4x256xf32, #tpu.memory_space<vmem>>, vector<1x4x256xf32>,
    } else {
    }
    %c0 = arith.constant 0 : index
    %c0_1 = arith.constant 0 : index
    %c0_2 = arith.constant 0 : index
    %3 = vector.load %arg11[%c0, %c0_1, %c0_2] : memref<1x4x256xf32, #tpu.memory_space<vmem>>, vector<1x4x256xf32>
    %c0_3 = arith.constant 0 : index
    %c0_4 = arith.constant 0 : index
    %c0_5 = arith.constant 0 : index
    %4 = vector.load %arg2[%c0_3, %c0_4, %c0_5] : memref<1x4x256xf32, #tpu.memory_space<vmem>>, vector<1x4x256xf32>
    %5 = arith.addf %3, %4 : vector<1x4x256xf32>
    %c0_6 = arith.constant 0 : index
    %c0_7 = arith.constant 0 : index
    %c0_8 = arith.constant 0 : index
    %6 = vector.load %arg11[%c0_6, %c0_7, %c0_8] : memref<1x4x256xf32, #tpu.memory_space<vmem>>, vector<1x4x256xf32>
    tpu.vector_store %arg11[%c0_6, %c0_7, %c0_8], %5 {strides = array<i32>} : memref<1x4x256xf32, #tpu.memory_space<vmem>>, vector<1x4x256xf32>,
    %c3_i32 = arith.constant 3 : i32
    %7 = arith.cmpi eq, %arg1, %c3_i32 : i32
    %8 = arith.extui %7 : i1 to i32
    %c0_i32_9 = arith.constant 0 : i32
    %9 = arith.cmpi ne, %8, %c0_i32_9 : i32
    scf.if %9 {
      %c0_10 = arith.constant 0 : index
      %c0_11 = arith.constant 0 : index
      %c0_12 = arith.constant 0 : index
      %10 = vector.load %arg11[%c0_10, %c0_11, %c0_12] : memref<1x4x256xf32, #tpu.memory_space<vmem>>, vector<1x4x256xf32>
      %cst = arith.constant dense<0.000000e+00> : vector<1x4xf32>
      %11 = vector.multi_reduction <add>, %10, %cst [2] : vector<1x4x256xf32> to vector<1x4xf32>
      %cst_13 = arith.constant 9.765625E-4 : f32
      %12 = vector.broadcast %cst_13 : f32 to vector<1x4xf32>
      %13 = arith.mulf %11, %12 : vector<1x4xf32>
      %c0_14 = arith.constant 0 : index
      %c0_15 = arith.constant 0 : index
      %14 = vector.load %arg4[%c0_14, %c0_15] : memref<4x16xf32, #tpu.memory_space<vmem>>, vector<4x16xf32>
      %cst_16 = arith.constant dense<0.000000e+00> : vector<1x16xf32>
      %15 = tpu.matmul %13, %14, %cst_16 {dimension_numbers = #tpu.dot_dimension_numbers<[1], [0], [0], [1], [0, 0, 1, 1], [], []>} : vector<1x4xf32>, vector<4x16xf32>, vector<1x16xf32> -> vector<1x16xf32>
      %c0_17 = arith.constant 0 : index
      %c0_18 = arith.constant 0 : index
      %16 = vector.load %arg5[%c0_17, %c0_18] : memref<1x16xf32, #tpu.memory_space<vmem>>, vector<1x16xf32>
      %17 = arith.addf %15, %16 : vector<1x16xf32>
      %c0_19 = arith.constant 0 : index
      %c0_20 = arith.constant 0 : index
      %c0_21 = arith.constant 0 : index
      %18 = vector.load %arg3[%c0_19, %c0_20, %c0_21] : memref<1x8x32xf32, #tpu.memory_space<vmem>>, vector<1x8x32xf32>
      %cst_22 = arith.constant dense<0.000000e+00> : vector<1x32xf32>
      %19 = vector.multi_reduction <add>, %18, %cst_22 [1] : vector<1x8x32xf32> to vector<1x32xf32>
      %cst_23 = arith.constant 8.000000e+00 : f32
      %20 = vector.broadcast %cst_23 : f32 to vector<1x32xf32>
      %21 = arith.divf %19, %20 : vector<1x32xf32>
      %c0_24 = arith.constant 0 : index
      %c0_25 = arith.constant 0 : index
      %22 = vector.load %arg6[%c0_24, %c0_25] : memref<32x16xf32, #tpu.memory_space<vmem>>, vector<32x16xf32>
      %cst_26 = arith.constant dense<0.000000e+00> : vector<1x16xf32>
      %23 = tpu.matmul %21, %22, %cst_26 {dimension_numbers = #tpu.dot_dimension_numbers<[1], [0], [0], [1], [0, 0, 1, 1], [], []>} : vector<1x32xf32>, vector<32x16xf32>, vector<1x16xf32> -> vector<1x16xf32>
      %c0_27 = arith.constant 0 : index
      %c0_28 = arith.constant 0 : index
      %24 = vector.load %arg7[%c0_27, %c0_28] : memref<1x16xf32, #tpu.memory_space<vmem>>, vector<1x16xf32>
      %25 = arith.addf %23, %24 : vector<1x16xf32>
      %c0_29 = arith.constant 0 : index
      %c0_30 = arith.constant 0 : index
      %26 = vector.load %arg8[%c0_29, %c0_30] : memref<32x128xf32, #tpu.memory_space<vmem>>, vector<16x128xf32>
      %cst_31 = arith.constant dense<0.000000e+00> : vector<1x128xf32>
      %27 = tpu.matmul %17, %26, %cst_31 {dimension_numbers = #tpu.dot_dimension_numbers<[1], [0], [0], [1], [0, 0, 1, 1], [], []>} : vector<1x16xf32>, vector<16x128xf32>, vector<1x128xf32> -> vector<1x128xf32>
      %c16 = arith.constant 16 : index
      %c0_32 = arith.constant 0 : index
      %28 = vector.load %arg8[%c16, %c0_32] : memref<32x128xf32, #tpu.memory_space<vmem>>, vector<16x128xf32>
      %cst_33 = arith.constant dense<0.000000e+00> : vector<1x128xf32>
      %29 = tpu.matmul %25, %28, %cst_33 {dimension_numbers = #tpu.dot_dimension_numbers<[1], [0], [0], [1], [0, 0, 1, 1], [], []>} : vector<1x16xf32>, vector<16x128xf32>, vector<1x128xf32> -> vector<1x128xf32>
      %30 = arith.addf %27, %29 : vector<1x128xf32>
      %c0_34 = arith.constant 0 : index
      %c0_35 = arith.constant 0 : index
      %31 = vector.load %arg9[%c0_34, %c0_35] : memref<1x128xf32, #tpu.memory_space<vmem>>, vector<1x128xf32>
      %32 = arith.addf %30, %31 : vector<1x128xf32>
      %c0_36 = arith.constant 0 : index
      %c0_37 = arith.constant 0 : index
      %c0_38 = arith.constant 0 : index
      %33 = vector.load %arg10[%c0_36, %c0_37, %c0_38] : memref<1x1x128xf32, #tpu.memory_space<vmem>>, vector<1x1x128xf32>
      %34 = vector.shape_cast %33 : vector<1x1x128xf32> to vector<1x128xf32>
      %35 = vector.shape_cast %32 : vector<1x128xf32> to vector<1x1x128xf32>
      tpu.vector_store %arg10[%c0_36, %c0_37, %c0_38], %35 {strides = array<i32>} : memref<1x1x128xf32, #tpu.memory_space<vmem>>, vector<1x1x128xf32>,
    } else {
    }
    return
  }
  func.func @transform_0(%arg0: i32, %arg1: i32) -> (i32, i32, i32) {
    %c0_i32 = arith.constant 0 : i32
    %c0_i32_0 = arith.constant 0 : i32
    return %arg0, %c0_i32, %arg1 : i32, i32, i32
  }
  func.func @transform_1(%arg0: i32, %arg1: i32) -> (i32, i32, i32) {
    %c0_i32 = arith.constant 0 : i32
    %c0_i32_0 = arith.constant 0 : i32
    %c0_i32_1 = arith.constant 0 : i32
    return %arg0, %c0_i32, %c0_i32_0 : i32, i32, i32
  }
  func.func @transform_2(%arg0: i32, %arg1: i32) -> (i32, i32) {
    %c0_i32 = arith.constant 0 : i32
    %c0_i32_0 = arith.constant 0 : i32
    %c0_i32_1 = arith.constant 0 : i32
    return %c0_i32, %c0_i32_0 : i32, i32
  }
  func.func @transform_3(%arg0: i32, %arg1: i32) -> (i32, i32) {
    %c0_i32 = arith.constant 0 : i32
    %c0_i32_0 = arith.constant 0 : i32
    %c0_i32_1 = arith.constant 0 : i32
    return %c0_i32, %c0_i32_0 : i32, i32
  }
  func.func @transform_4(%arg0: i32, %arg1: i32) -> (i32, i32) {
    %c0_i32 = arith.constant 0 : i32
    %c0_i32_0 = arith.constant 0 : i32
    %c0_i32_1 = arith.constant 0 : i32
    return %c0_i32, %c0_i32_0 : i32, i32
  }
  func.func @transform_5(%arg0: i32, %arg1: i32) -> (i32, i32) {
    %c0_i32 = arith.constant 0 : i32
    %c0_i32_0 = arith.constant 0 : i32
    %c0_i32_1 = arith.constant 0 : i32
    return %c0_i32, %c0_i32_0 : i32, i32
  }
  func.func @transform_6(%arg0: i32, %arg1: i32) -> (i32, i32) {
    %c0_i32 = arith.constant 0 : i32
    %c0_i32_0 = arith.constant 0 : i32
    %c0_i32_1 = arith.constant 0 : i32
    return %c0_i32, %c0_i32_0 : i32, i32
  }
  func.func @transform_7(%arg0: i32, %arg1: i32) -> (i32, i32) {
    %c0_i32 = arith.constant 0 : i32
    %c0_i32_0 = arith.constant 0 : i32
    %c0_i32_1 = arith.constant 0 : i32
    return %c0_i32, %c0_i32_0 : i32, i32
  }
  func.func @transform_8(%arg0: i32, %arg1: i32) -> (i32, i32, i32) {
    %c0_i32 = arith.constant 0 : i32
    %c0_i32_0 = arith.constant 0 : i32
    %c0_i32_1 = arith.constant 0 : i32
    return %arg0, %c0_i32, %c0_i32_0 : i32, i32, i32
  }
}

</mosaic_0001>

<llo_original>
// kernel: tpu_custom_call.1
$region0: #{tpu_custom_call.1}
  #allocation0 [shape = 'u32[]', space=smem, size = 0x4, offset = 0x4, fixed_abs, tag = 'smem constant byte address 0x4 - core index']
  #allocation1 [shape = 'u32[72,128]{1,0:T(1,128)}', space=vmem, size = 0x9000, scoped, tag = 'internal scratch']
  #allocation2 [shape = 'f32[1,4,256]{2,1,0:T(4,128)}', space=vmem, size = 0x1000, scoped, tag = 'scratch operand']
  %s0 = inlined_call_operand.hbm [shape: f32[2,4,1024], index: 0, kind: input, shape index: {}]
  %s1 = inlined_call_operand.vmem [shape: f32[2,8,32], index: 1, kind: input, shape index: {}]
  %s2 = inlined_call_operand.vmem [shape: f32[4,16], index: 2, kind: input, shape index: {}]
  %s3 = inlined_call_operand.vmem [shape: f32[1,16], index: 3, kind: input, shape index: {}]
  %s4 = inlined_call_operand.vmem [shape: f32[32,16], index: 4, kind: input, shape index: {}]
  %s5 = inlined_call_operand.hbm [shape: f32[1,16], index: 5, kind: input, shape index: {}]
  %s6 = inlined_call_operand.vmem [shape: f32[32,128], index: 6, kind: input, shape index: {}]
  %s7 = inlined_call_operand.vmem [shape: f32[1,128], index: 7, kind: input, shape index: {}]
  %s8 = inlined_call_operand.hbm [shape: f32[2,1,128], index: 8, kind: output, shape index: {}]
  %s9 = sld [smem:[#allocation0]]
  $region81: #{tpu_custom_call.1} parent=0
    _
  %s11 = ssub.s32 1, %s9
  %s12 = scalar_select 0, %s11, %s9
  $region1: #{tpu_custom_call.1} parent=0
    #allocation3 [shape = 'u8[8192]{0}', space=vmem, size = 0x2000, scoped, tag = 'input window, operand 0']
    #allocation4 [shape = 's32[2]{0}', space=sflag, size = 0x8, scoped, tag = 'scoped memory for tpu_custom_call.1']
    #allocation5 [shape = 's32[2]{0}', space=sflag, size = 0x8, scoped, tag = 'scoped memory for tpu_custom_call.1']
    #allocation6 [shape = 'u8[512]{0}', space=vmem, size = 0x400, scoped, tag = 'input window, operand 5, single buffered']
    #allocation7 [shape = 's32[1]{0}', space=sflag, size = 0x4, scoped, tag = 'scoped memory for tpu_custom_call.1']
    #allocation8 [shape = 'u8[1024]{0}', space=vmem, size = 0x400, scoped, tag = 'output window, operand 0']
    %13 = vsyncpa [#allocation4], 0
    %s14 = scalar_lea.sflag [#allocation4], 1
    %15 = vsyncpa %s14, 0
    %16 = vsyncpa [#allocation7], 0
    %17 = vsyncpa [#allocation5], 0
    %s18 = scalar_lea.sflag [#allocation5], 1
    %19 = vsyncpa %s18, 0
    loop: start=0, step=1, limit=10
    $region2: #{tpu_custom_call.1} parent=1 // loop_pre_header
      _
    $region3: #{tpu_custom_call.1} parent=1 // loop_header
      %s21 = sphi 0, %s25
      %p22 = scmp.ge.s32.totalorder %s21, 10
      %s28 = sphi 0, %s40
      %s29 = sphi 0, %s36
      %s30 = sphi 0, %s28
      %s31 = sphi 0, %s29
      %s32 = sphi 0, %s30
      %s33 = sphi 0, %s31
      %s45 = sphi 0, %s47
      %s48 = sphi 0, %s45
      %s49 = sphi 0, %s48
      %s65 = sphi 0, %s49
      %s71 = sphi 0, %s73
      %s74 = sphi 0, %s71
      %s75 = sphi 0, %s74
      %s91 = sphi 0, %s75
      %s95 = sphi 0, %s95
      %s97 = sphi 0, %s95
      %s98 = sphi 0, %s97
      %s112 = sphi 0, %s98
      %s116 = sphi 0, %s116
      %s118 = sphi 0, %s116
      %s119 = sphi 0, %s118
      %s133 = sphi 0, %s119
      %s137 = sphi 0, %s137
      %s139 = sphi 0, %s137
      %s140 = sphi 0, %s139
      %s154 = sphi 0, %s140
      %s158 = sphi 0, %s158
      %s160 = sphi 0, %s158
      %s161 = sphi 0, %s160
      %s175 = sphi 0, %s161
      %s179 = sphi 0, %s179
      %s181 = sphi 0, %s179
      %s182 = sphi 0, %s181
      %s196 = sphi 0, %s182
      %s200 = sphi 0, %s200
      %s202 = sphi 0, %s200
      %s203 = sphi 0, %s202
      %s217 = sphi 0, %s203
      %s223 = sphi 0, %s225
      %s226 = sphi 0, %s223
      %s227 = sphi 0, %s226
      %s243 = sphi 0, %s227
    $region4: #{tpu_custom_call.1} parent=1 // loop_header_branch
      %24 = sbr.rel (%p22) target = $region8
    $region5: #{tpu_custom_call.1} parent=1 // loop_body
      %s26 = ssub.s32 %s21, 1
      %s27 = ssub.s32 %s21, 2
      %s34 = sadd.s32 1, %s29
      %p35 = scmp.ge.s32.totalorder %s34, 4
      %s36 = scalar_select %p35, 0, %s34
      %s37 = sadd.s32 1, %s28
      %s38 = scalar_select %p35, %s37, %s28
      %p39 = scmp.ge.s32.totalorder %s38, 2
      %s40 = scalar_select %p39, 0, %s38
      %s41 = ssub.s32 %s28, %s40
      %s42 = ssub.s32 %s29, %s36
      %s43 = sor.u32 %s41, %s42
      %p44 = scmp.eq.s32.totalorder %s43, 0
      %s46 = sadd.s32 %s45, 1
      %s47 = scalar_select %p44, %s45, %s46
      %p50 = pneg %p44
      %p51 = scmp.eq.s32.totalorder %s21, 7
      %p52 = por %p50, %p51
      %p53 = scmp.ne.s32.totalorder %s45, %s48
      %p54 = scmp.eq.s32.totalorder %s21, 0
      %p55 = por %p53, %p54
      %p56 = scmp.ne.s32.totalorder %s45, %s48
      %p57 = scmp.eq.s32.totalorder %s26, 7
      %p58 = por %p56, %p57
      %p59 = scmp.ne.s32.totalorder %s48, %s49
      %p60 = scmp.eq.s32.totalorder %s26, 0
      %p61 = por %p59, %p60
      %p62 = scmp.ne.s32.totalorder %s48, %s49
      %p63 = scmp.eq.s32.totalorder %s27, 7
      %p64 = por %p62, %p63
      %p66 = scmp.ne.s32.totalorder %s49, %s65
      %p67 = scmp.eq.s32.totalorder %s27, 0
      %p68 = por %p66, %p67
      %s69 = ssub.s32 %s28, %s40
      %p70 = scmp.eq.s32.totalorder %s69, 0
      %s72 = sadd.s32 %s71, 1
      %s73 = scalar_select %p70, %s71, %s72
      %p76 = pneg %p70
      %p77 = scmp.eq.s32.totalorder %s21, 7
      %p78 = por %p76, %p77
      %p79 = scmp.ne.s32.totalorder %s71, %s74
      %p80 = scmp.eq.s32.totalorder %s21, 0
      %p81 = por %p79, %p80
      %p82 = scmp.ne.s32.totalorder %s71, %s74
      %p83 = scmp.eq.s32.totalorder %s26, 7
      %p84 = por %p82, %p83
      %p85 = scmp.ne.s32.totalorder %s74, %s75
      %p86 = scmp.eq.s32.totalorder %s26, 0
      %p87 = por %p85, %p86
      %p88 = scmp.ne.s32.totalorder %s74, %s75
      %p89 = scmp.eq.s32.totalorder %s27, 7
      %p90 = por %p88, %p89
      %p92 = scmp.ne.s32.totalorder %s75, %s91
      %p93 = scmp.eq.s32.totalorder %s27, 0
      %p94 = por %p92, %p93
      %s96 = sadd.s32 %s95, 1
      %p99 = scmp.eq.s32.totalorder %s21, 7
      %p100 = scmp.ne.s32.totalorder %s95, %s97
      %p101 = scmp.eq.s32.totalorder %s21, 0
      %p102 = por %p100, %p101
      %p103 = scmp.ne.s32.totalorder %s95, %s97
      %p104 = scmp.eq.s32.totalorder %s26, 7
      %p105 = por %p103, %p104
      %p106 = scmp.ne.s32.totalorder %s97, %s98
      %p107 = scmp.eq.s32.totalorder %s26, 0
      %p108 = por %p106, %p107
      %p109 = scmp.ne.s32.totalorder %s97, %s98
      %p110 = scmp.eq.s32.totalorder %s27, 7
      %p111 = por %p109, %p110
      %p113 = scmp.ne.s32.totalorder %s98, %s112
      %p114 = scmp.eq.s32.totalorder %s27, 0
      %p115 = por %p113, %p114
      %s117 = sadd.s32 %s116, 1
      %p120 = scmp.eq.s32.totalorder %s21, 7
      %p121 = scmp.ne.s32.totalorder %s116, %s118
      %p122 = scmp.eq.s32.totalorder %s21, 0
      %p123 = por %p121, %p122
      %p124 = scmp.ne.s32.totalorder %s116, %s118
      %p125 = scmp.eq.s32.totalorder %s26, 7
      %p126 = por %p124, %p125
      %p127 = scmp.ne.s32.totalorder %s118, %s119
      %p128 = scmp.eq.s32.totalorder %s26, 0
      %p129 = por %p127, %p128
      %p130 = scmp.ne.s32.totalorder %s118, %s119
      %p131 = scmp.eq.s32.totalorder %s27, 7
      %p132 = por %p130, %p131
      %p134 = scmp.ne.s32.totalorder %s119, %s133
      %p135 = scmp.eq.s32.totalorder %s27, 0
      %p136 = por %p134, %p135
      %s138 = sadd.s32 %s137, 1
      %p141 = scmp.eq.s32.totalorder %s21, 7
      %p142 = scmp.ne.s32.totalorder %s137, %s139
      %p143 = scmp.eq.s32.totalorder %s21, 0
      %p144 = por %p142, %p143
      %p145 = scmp.ne.s32.totalorder %s137, %s139
      %p146 = scmp.eq.s32.totalorder %s26, 7
      %p147 = por %p145, %p146
      %p148 = scmp.ne.s32.totalorder %s139, %s140
      %p149 = scmp.eq.s32.totalorder %s26, 0
      %p150 = por %p148, %p149
      %p151 = scmp.ne.s32.totalorder %s139, %s140
      %p152 = scmp.eq.s32.totalorder %s27, 7
      %p153 = por %p151, %p152
      %p155 = scmp.ne.s32.totalorder %s140, %s154
      %p156 = scmp.eq.s32.totalorder %s27, 0
      %p157 = por %p155, %p156
      %s159 = sadd.s32 %s158, 1
      %p162 = scmp.eq.s32.totalorder %s21, 7
      %p163 = scmp.ne.s32.totalorder %s158, %s160
      %p164 = scmp.eq.s32.totalorder %s21, 0
      %p165 = por %p163, %p164
      %p166 = scmp.ne.s32.totalorder %s158, %s160
      %p167 = scmp.eq.s32.totalorder %s26, 7
      %p168 = por %p166, %p167
      %p169 = scmp.ne.s32.totalorder %s160, %s161
      %p170 = scmp.eq.s32.totalorder %s26, 0
      %p171 = por %p169, %p170
      %p172 = scmp.ne.s32.totalorder %s160, %s161
      %p173 = scmp.eq.s32.totalorder %s27, 7
      %p174 = por %p172, %p173
      %p176 = scmp.ne.s32.totalorder %s161, %s175
      %p177 = scmp.eq.s32.totalorder %s27, 0
      %p178 = por %p176, %p177
      %s180 = sadd.s32 %s179, 1
      %p183 = scmp.eq.s32.totalorder %s21, 7
      %p184 = scmp.ne.s32.totalorder %s179, %s181
      %p185 = scmp.eq.s32.totalorder %s21, 0
      %p186 = por %p184, %p185
      %p187 = scmp.ne.s32.totalorder %s179, %s181
      %p188 = scmp.eq.s32.totalorder %s26, 7
      %p189 = por %p187, %p188
      %p190 = scmp.ne.s32.totalorder %s181, %s182
      %p191 = scmp.eq.s32.totalorder %s26, 0
      %p192 = por %p190, %p191
      %p193 = scmp.ne.s32.totalorder %s181, %s182
      %p194 = scmp.eq.s32.totalorder %s27, 7
      %p195 = por %p193, %p194
      %p197 = scmp.ne.s32.totalorder %s182, %s196
      %p198 = scmp.eq.s32.totalorder %s27, 0
      %p199 = por %p197, %p198
      %s201 = sadd.s32 %s200, 1
      %p204 = scmp.eq.s32.totalorder %s21, 7
      %p205 = scmp.ne.s32.totalorder %s200, %s202
      %p206 = scmp.eq.s32.totalorder %s21, 0
      %p207 = por %p205, %p206
      %p208 = scmp.ne.s32.totalorder %s200, %s202
      %p209 = scmp.eq.s32.totalorder %s26, 7
      %p210 = por %p208, %p209
      %p211 = scmp.ne.s32.totalorder %s202, %s203
      %p212 = scmp.eq.s32.totalorder %s26, 0
      %p213 = por %p211, %p212
      %p214 = scmp.ne.s32.totalorder %s202, %s203
      %p215 = scmp.eq.s32.totalorder %s27, 7
      %p216 = por %p214, %p215
      %p218 = scmp.ne.s32.totalorder %s203, %s217
      %p219 = scmp.eq.s32.totalorder %s27, 0
      %p220 = por %p218, %p219
      %s221 = ssub.s32 %s28, %s40
      %p222 = scmp.eq.s32.totalorder %s221, 0
      %s224 = sadd.s32 %s223, 1
      %s225 = scalar_select %p222, %s223, %s224
      %p228 = pneg %p222
      %p229 = scmp.eq.s32.totalorder %s21, 7
      %p230 = por %p228, %p229
      %p231 = scmp.ne.s32.totalorder %s223, %s226
      %p232 = scmp.eq.s32.totalorder %s21, 0
      %p233 = por %p231, %p232
      %p234 = scmp.ne.s32.totalorder %s223, %s226
      %p235 = scmp.eq.s32.totalorder %s26, 7
      %p236 = por %p234, %p235
      %p237 = scmp.ne.s32.totalorder %s226, %s227
      %p238 = scmp.eq.s32.totalorder %s26, 0
      %p239 = por %p237, %p238
      %p240 = scmp.ne.s32.totalorder %s226, %s227
      %p241 = scmp.eq.s32.totalorder %s27, 7
      %p242 = por %p240, %p241
      %p244 = scmp.ne.s32.totalorder %s227, %s243
      %p245 = scmp.eq.s32.totalorder %s27, 0
      %p246 = por %p244, %p245
      %p247 = scmp.le.s32.totalorder 1, %s21
      %p248 = scmp.lt.s32.totalorder %s21, 9
      %p249 = pnand %p247, %p248
      %p250 = pneg %p249
      // Predicated region
      $region9: #{tpu_custom_call.1} parent=5 // pred_check
        _
      $region10: #{tpu_custom_call.1} parent=5 // pred_check_branch
        %252 = sbr.rel (%p249) target = $region12
      $region11: #{tpu_custom_call.1} parent=5 // pred_region
        %s253 = ssub.s32 %s21, 1
        // Predicated region
        $region13: #{tpu_custom_call.1} parent=11 // pred_check
          %p254 = pneg %p108
        $region14: #{tpu_custom_call.1} parent=11 // pred_check_branch
          %256 = sbr.rel (%p254) target = $region16
        $region15: #{tpu_custom_call.1} parent=11 // pred_region
          _
        $region16: #{tpu_custom_call.1} parent=11 // pred_fallthru
          _
        // Predicated region
        $region17: #{tpu_custom_call.1} parent=11 // pred_check
          %p257 = pneg %p129
        $region18: #{tpu_custom_call.1} parent=11 // pred_check_branch
          %259 = sbr.rel (%p257) target = $region20
        $region19: #{tpu_custom_call.1} parent=11 // pred_region
          _
        $region20: #{tpu_custom_call.1} parent=11 // pred_fallthru
          _
        // Predicated region
        $region21: #{tpu_custom_call.1} parent=11 // pred_check
          %p260 = pneg %p150
        $region22: #{tpu_custom_call.1} parent=11 // pred_check_branch
          %262 = sbr.rel (%p260) target = $region24
        $region23: #{tpu_custom_call.1} parent=11 // pred_region
          _
        $region24: #{tpu_custom_call.1} parent=11 // pred_fallthru
          _
        // Predicated region
        $region25: #{tpu_custom_call.1} parent=11 // pred_check
          %p263 = pneg %p171
        $region26: #{tpu_custom_call.1} parent=11 // pred_check_branch
          %265 = sbr.rel (%p263) target = $region28
        $region27: #{tpu_custom_call.1} parent=11 // pred_region
          %267 = vsyncadd [#allocation7], 0
          %s269 = sshll.u32 %s5, 4
          %s270 = int_to_ptr.hbm [resolvable:$true] %s269
          %s271 = sshll.u32 [#allocation6], 4
          %s272 = int_to_ptr.vmem [resolvable:$true] %s271
          %274 = dma.hbm_to_vmem [thread:$0]  %s270, 16, %s272, [#allocation7]
        $region28: #{tpu_custom_call.1} parent=11 // pred_fallthru
          _
        // Predicated region
        $region29: #{tpu_custom_call.1} parent=11 // pred_check
          %p275 = pneg %p192
        $region30: #{tpu_custom_call.1} parent=11 // pred_check_branch
          %277 = sbr.rel (%p275) target = $region32
        $region31: #{tpu_custom_call.1} parent=11 // pred_region
          _
        $region32: #{tpu_custom_call.1} parent=11 // pred_fallthru
          _
        // Predicated region
        $region33: #{tpu_custom_call.1} parent=11 // pred_check
          %p278 = pneg %p213
        $region34: #{tpu_custom_call.1} parent=11 // pred_check_branch
          %280 = sbr.rel (%p278) target = $region36
        $region35: #{tpu_custom_call.1} parent=11 // pred_region
          _
        $region36: #{tpu_custom_call.1} parent=11 // pred_fallthru
          _
      $region12: #{tpu_custom_call.1} parent=5 // pred_fallthru
        _
      %p281 = scmp.lt.s32.totalorder %s21, 8
      // Predicated region
      $region37: #{tpu_custom_call.1} parent=5 // pred_check
        %p282 = pneg %p281
      $region38: #{tpu_custom_call.1} parent=5 // pred_check_branch
        %284 = sbr.rel (%p282) target = $region40
      $region39: #{tpu_custom_call.1} parent=5 // pred_region
        // Predicated region
        $region41: #{tpu_custom_call.1} parent=39 // pred_check
          %p285 = pneg %p55
        $region42: #{tpu_custom_call.1} parent=39 // pred_check_branch
          %287 = sbr.rel (%p285) target = $region44
        $region43: #{tpu_custom_call.1} parent=39 // pred_region
          %s288 = sand.u32 %s45, 1
          %s289 = scalar_lea.sflag [#allocation4], %s288
          %s290 = sand.u32 %s45, 1
          %s291 = smul.addr %s290, 8
          %s292 = scalar_lea.vmem [#allocation3], %s291
          %s293 = smul.u32 2, %s29
          %295 = vsyncadd %s289, 0
          %s296 = smul.addr %s28, 8
          %s297 = sadd.s32 %s293, %s296
          %s298 = smul.addr %s297, 4
          %s299 = scalar_lea.hbm %s0, %s298
          %s301 = sshll.u32 %s299, 4
          %s302 = int_to_ptr.hbm [resolvable:$true] %s301
          %s303 = sshll.u32 %s292, 4
          %s304 = int_to_ptr.vmem [resolvable:$true] %s303
          %306 = dma.hbm_to_vmem [thread:$0]  %s302, 128, %s304, %s289
        $region44: #{tpu_custom_call.1} parent=39 // pred_fallthru
          _
        // Predicated region
        $region45: #{tpu_custom_call.1} parent=39 // pred_check
          %p307 = pneg %p81
        $region46: #{tpu_custom_call.1} parent=39 // pred_check_branch
          %309 = sbr.rel (%p307) target = $region48
        $region47: #{tpu_custom_call.1} parent=39 // pred_region
          %p310 = scmp.lt.s32.totalorder %s28, 1
          %s311 = scalar_select %p310, %s28, 1
          %s312 = smul.addr %s311, 8
          %s313 = scalar_lea.vmem %s1, %s312
        $region48: #{tpu_custom_call.1} parent=39 // pred_fallthru
          _
      $region40: #{tpu_custom_call.1} parent=5 // pred_fallthru
        _
      %p314 = scmp.le.s32.totalorder 1, %s21
      %p315 = scmp.lt.s32.totalorder %s21, 9
      %p316 = pnand %p314, %p315
      %p317 = pneg %p316
      // Predicated region
      $region49: #{tpu_custom_call.1} parent=5 // pred_check
        _
      $region50: #{tpu_custom_call.1} parent=5 // pred_check_branch
        %319 = sbr.rel (%p316) target = $region52
      $region51: #{tpu_custom_call.1} parent=5 // pred_region
        %s320 = ssub.s32 %s21, 1
        %s321 = sand.u32 %s48, 1
        %s322 = scalar_lea.sflag [#allocation4], %s321
        %s323 = sand.u32 %s48, 1
        %s324 = smul.addr %s323, 8
        %s325 = scalar_lea.vmem [#allocation3], %s324
        // Predicated region
        $region53: #{tpu_custom_call.1} parent=51 // pred_check
          %p326 = pneg %p61
        $region54: #{tpu_custom_call.1} parent=51 // pred_check_branch
          %328 = sbr.rel (%p326) target = $region56
        $region55: #{tpu_custom_call.1} parent=51 // pred_region
          %330 = dma.done %s322, 128
        $region56: #{tpu_custom_call.1} parent=51 // pred_fallthru
          _
        // Predicated region
        $region57: #{tpu_custom_call.1} parent=51 // pred_check
          %p331 = pneg %p171
        $region58: #{tpu_custom_call.1} parent=51 // pred_check_branch
          %333 = sbr.rel (%p331) target = $region60
        $region59: #{tpu_custom_call.1} parent=51 // pred_region
          %335 = dma.done [#allocation7], 16
        $region60: #{tpu_custom_call.1} parent=51 // pred_fallthru
          _
        %s336 = sand.u32 %s48, 1
        %s337 = scalar_lea.sflag [#allocation4], %s336
        %s338 = sand.u32 %s48, 1
        %s339 = smul.addr %s338, 8
        %s340 = scalar_lea.vmem [#allocation3], %s339
        %p341 = pneg %p61
        %p342 = pneg %p58
        %p343 = scmp.lt.s32.totalorder %s30, 1
        %s344 = scalar_select %p343, %s30, 1
        %s345 = smul.addr %s344, 8
        %s346 = scalar_lea.vmem %s1, %s345
        %p347 = pneg %p87
        %p348 = pneg %p84
        %p349 = pneg %p108
        %p350 = pneg %p105
        %p351 = pneg %p129
        %p352 = pneg %p126
        %p353 = pneg %p150
        %p354 = pneg %p147
        %p355 = pneg %p171
        %p356 = pneg %p168
        %p357 = pneg %p192
        %p358 = pneg %p189
        %p359 = pneg %p213
        %p360 = pneg %p210
        %p361 = pneg %p239
        %p362 = pneg %p236
        %s363 = sand.u32 %s226, 1
        %s364 = scalar_lea.sflag [#allocation5], %s363
        %s365 = sand.u32 %s226, 1
        %s366 = scalar_lea.vmem [#allocation8], %s365
        %s367 = smul.u32 2, %s31
        %p368 = scmp.lt.s32.totalorder %s30, 1
        %s369 = scalar_select %p368, %s30, 1
        %s370 = smul.addr %s369, 8
        %s371 = scalar_lea.vmem %s1, %s370
        %p372 = scmp.eq.s32.totalorder %s31, 0
        // Predicated region
        $region61: #{tpu_custom_call.1} parent=51 // pred_check
          %p373 = pneg %p372
        $region62: #{tpu_custom_call.1} parent=51 // pred_check_branch
          %375 = sbr.rel (%p373) target = $region64
        $region63: #{tpu_custom_call.1} parent=51 // pred_region
          %376 = vst [vmem:[#allocation2] sm:$0xff] 0.0
        $region64: #{tpu_custom_call.1} parent=51 // pred_fallthru
          _
        %v377 = vld [vmem:[#allocation2] sm:$0xff]
        %v378 = vld [vmem:[%s325] sm:$0xff]
        %v379 = vadd.f32 %v377, %v378
        %380 = vst [vmem:[#allocation2] sm:$0xff] %v379
        %p381 = scmp.eq.s32.totalorder %s31, 3
        // Predicated region
        $region65: #{tpu_custom_call.1} parent=51 // pred_check
          %p382 = pneg %p381
        $region66: #{tpu_custom_call.1} parent=51 // pred_check_branch
          %384 = sbr.rel (%p382) target = $region68
        $region67: #{tpu_custom_call.1} parent=51 // pred_region
          %v385 = vld [vmem:[#allocation2] sm:$0xff]
          %387 = vst [vmem:[#allocation1] ss:$2 sm:$0xff] %v385
          %v388 = vld.sshfl [vmem:[#allocation1] sm:$0xff pattern:$0x75316420]
          %v389 = vld.sshfl [vmem:[#allocation1 + $0x8] sm:$0xff pattern:$0x75316420]
          %vm392 = vcmask 1043456
          %v393 = vsel %vm392, %v388, 0.0
          %v394 = vsel %vm392, %v389, 0.0
          %v395 = vadd.f32 %v393, %v394
          %396 = vadd.xlane.f32.xlu0 %v395
          %v397 = vpop.xlane.xlu0 %396
          %v398 = vmul.f32 %v397, 0.0009765625
          %v399 = vld [vmem:[%s2] sm:$0xf]
          %v400 = vld [vmem:[%s3] sm:$0x1]
          %v402 = vlaneseq
          %v403 = vand.u32 %v402, 127
          %v404 = vperm.slane %v398, %v403
          %vm405 = vcmask 31744
          %v406 = vsel %vm405, %v404, 0
          %v409 = vsel %vm392, %v399, 0
          %411 = vmatpush.msra.mxu0 0.0
          %412 = vmatpush.msra.mxu0 0.0
          %413 = vmatpush.msra.mxu0 0.0
          %414 = vmatpush.msra.mxu0 0.0
          %415 = vmatpush.msra.mxu0 0.0
          %416 = vmatpush.msra.mxu0 0.0
          %417 = vmatpush.msra.mxu0 0.0
          %418 = vmatpush.msra.mxu0 0.0
          %419 = vmatpush.msra.mxu0 0.0
          %420 = vmatpush.msra.mxu0 0.0
          %421 = vmatpush.msra.mxu0 0.0
          %422 = vmatpush.msra.mxu0 0.0
          %423 = vmatpush.msra.mxu0 0.0
          %424 = vmatpush.msra.mxu0 0.0
          %425 = vmatpush.msra.mxu0 0.0
          %426 = vmatpush.msra.mxu0 %v409
          %427 = vmatmul.f32.gmra.mxu0 %v406
          %v428 = vpop.f32.mrf.mxu0
          %v429 = vadd.f32 %v400, %v428
          %430 = vdwg.mxu0
          %v431 = vld [vmem:[%s371] sm:$0xff]
          %vm432 = vcmask 261120
          %v433 = vsel %vm432, %v431, 0.0
          %v434 = vrot.slane %v433, 4
          %v435 = vadd.f32 %v433, %v434
          %v436 = vrot.slane %v435, 2
          %v437 = vadd.f32 %v435, %v436
          %v438 = vrot.slane %v437, 1
          %v439 = vadd.f32 %v437, %v438
          %v440 = vrcp.pop 8.0
          %v441 = vmul.f32 8.0, %v440
          %v442 = vsub.f32 1.0, %v441
          %v443 = vmul.f32 %v440, %v442
          %v444 = vadd.f32 %v440, %v443
          %vm445 = vweird.f32 %v440
          %v446 = vsel %vm445, %v440, %v444
          %v447 = vmul.f32 %v439, %v446
          %v448 = vld [vmem:[%s4] sm:$0xff]
          %v449 = vld [vmem:[%s4 + $0x8] sm:$0xff]
          %v450 = vld [vmem:[%s4 + $0x10] sm:$0xff]
          %v451 = vld [vmem:[%s4 + $0x18] sm:$0xff]
          %v452 = vld [vmem:[#allocation6] sm:$0x1]
          %v454 = vsel %vm432, %v447, 0
          %456 = vmatpush.msra.mxu0 0.0
          %457 = vmatpush.msra.mxu0 0.0
          %458 = vmatpush.msra.mxu0 0.0
          %459 = vmatpush.msra.mxu0 0.0
          %460 = vmatpush.msra.mxu0 0.0
          %461 = vmatpush.msra.mxu0 0.0
          %462 = vmatpush.msra.mxu0 0.0
          %463 = vmatpush.msra.mxu0 0.0
          %464 = vmatpush.msra.mxu0 0.0
          %465 = vmatpush.msra.mxu0 0.0
          %466 = vmatpush.msra.mxu0 0.0
          %467 = vmatpush.msra.mxu0 0.0
          %468 = vmatpush.msra.mxu0 %v451
          %469 = vmatpush.msra.mxu0 %v450
          %470 = vmatpush.msra.mxu0 %v449
          %471 = vmatpush.msra.mxu0 %v448
          %472 = vmatmul.f32.gmra.mxu0 %v454
          %v473 = vpop.f32.mrf.mxu0
          %v474 = vadd.f32 %v452, %v473
          %475 = vdwg.mxu0
          %v476 = vld [vmem:[%s6] sm:$0xff]
          %v477 = vld [vmem:[%s6 + $0x8] sm:$0xff]
          %v478 = vld [vmem:[%s6 + $0x10] sm:$0xff]
          %v479 = vld [vmem:[%s6 + $0x18] sm:$0xff]
          %vm480 = vcmask 130048
          %v482 = vsel %vm480, %v474, 0
          %484 = vmatpush.msra.mxu0 0.0
          %485 = vmatpush.msra.mxu0 0.0
          %486 = vmatpush.msra.mxu0 0.0
          %487 = vmatpush.msra.mxu0 0.0
          %488 = vmatpush.msra.mxu0 0.0
          %489 = vmatpush.msra.mxu0 0.0
          %490 = vmatpush.msra.mxu0 0.0
          %491 = vmatpush.msra.mxu0 0.0
          %492 = vmatpush.msra.mxu0 0.0
          %493 = vmatpush.msra.mxu0 0.0
          %494 = vmatpush.msra.mxu0 0.0
          %495 = vmatpush.msra.mxu0 0.0
          %496 = vmatpush.msra.mxu0 0.0
          %497 = vmatpush.msra.mxu0 0.0
          %498 = vmatpush.msra.mxu0 %v479
          %499 = vmatpush.msra.mxu0 %v478
          %500 = vmatmul.f32.gmra.mxu0 %v482
          %v501 = vpop.f32.mrf.mxu0
          %v502 = vadd.f32 0.0, %v501
          %503 = vdwg.mxu0
          %v505 = vsel %vm480, %v429, 0
          %507 = vmatpush.msra.mxu0 0.0
          %508 = vmatpush.msra.mxu0 0.0
          %509 = vmatpush.msra.mxu0 0.0
          %510 = vmatpush.msra.mxu0 0.0
          %511 = vmatpush.msra.mxu0 0.0
          %512 = vmatpush.msra.mxu0 0.0
          %513 = vmatpush.msra.mxu0 0.0
          %514 = vmatpush.msra.mxu0 0.0
          %515 = vmatpush.msra.mxu0 0.0
          %516 = vmatpush.msra.mxu0 0.0
          %517 = vmatpush.msra.mxu0 0.0
          %518 = vmatpush.msra.mxu0 0.0
          %519 = vmatpush.msra.mxu0 0.0
          %520 = vmatpush.msra.mxu0 0.0
          %521 = vmatpush.msra.mxu0 %v477
          %522 = vmatpush.msra.mxu0 %v476
          %523 = vmatmul.f32.gmra.mxu0 %v505
          %v524 = vpop.f32.mrf.mxu0
          %v525 = vadd.f32 %v502, %v524
          %526 = vdwg.mxu0
          %v527 = vld [vmem:[%s7] sm:$0x1]
          %v528 = vadd.f32 %v525, %v527
          %529 = vst [vmem:[%s366] sm:$0x1] %v528
        $region68: #{tpu_custom_call.1} parent=51 // pred_fallthru
          _
        %s530 = sand.u32 %s226, 1
        %s531 = scalar_lea.sflag [#allocation5], %s530
        %s532 = sand.u32 %s226, 1
        %s533 = scalar_lea.vmem [#allocation8], %s532
        // Predicated region
        $region69: #{tpu_custom_call.1} parent=51 // pred_check
          %p534 = pneg %p236
        $region70: #{tpu_custom_call.1} parent=51 // pred_check_branch
          %536 = sbr.rel (%p534) target = $region72
        $region71: #{tpu_custom_call.1} parent=51 // pred_region
          %538 = vsyncadd %s531, 0
          %s539 = scalar_lea.hbm %s8, %s30
          %s541 = sshll.u32 %s533, 4
          %s542 = int_to_ptr.vmem [resolvable:$true] %s541
          %s543 = sshll.u32 %s539, 4
          %s544 = int_to_ptr.hbm [resolvable:$true] %s543
          %546 = dma.vmem_to_hbm [thread:$0]  %s542, 16, %s544, %s531
        $region72: #{tpu_custom_call.1} parent=51 // pred_fallthru
          _
      $region52: #{tpu_custom_call.1} parent=5 // pred_fallthru
        _
      %p547 = scmp.le.s32.totalorder 2, %s21
      // Predicated region
      $region73: #{tpu_custom_call.1} parent=5 // pred_check
        %p548 = pneg %p547
      $region74: #{tpu_custom_call.1} parent=5 // pred_check_branch
        %550 = sbr.rel (%p548) target = $region76
      $region75: #{tpu_custom_call.1} parent=5 // pred_region
        %s551 = ssub.s32 %s21, 2
        // Predicated region
        $region77: #{tpu_custom_call.1} parent=75 // pred_check
          %p552 = pneg %p242
        $region78: #{tpu_custom_call.1} parent=75 // pred_check_branch
          %554 = sbr.rel (%p552) target = $region80
        $region79: #{tpu_custom_call.1} parent=75 // pred_region
          %s555 = sand.u32 %s227, 1
          %s556 = scalar_lea.sflag [#allocation5], %s555
          %s557 = sand.u32 %s227, 1
          %s558 = scalar_lea.vmem [#allocation8], %s557
          %560 = dma.done %s556, 16
        $region80: #{tpu_custom_call.1} parent=75 // pred_fallthru
          _
      $region76: #{tpu_custom_call.1} parent=5 // pred_fallthru
        _
    $region6: #{tpu_custom_call.1} parent=1 // loop_footer
      %s25 = sadd.s32 1, %s21
    $region7: #{tpu_custom_call.1} parent=1 // loop_footer_branch
      %20 = sbr.rel target = $region3
    $region8: #{tpu_custom_call.1} parent=1 // loop_exit
      _
    %561 = vsyncpa [#allocation4], 1
    %s562 = scalar_lea.sflag [#allocation4], 1
    %563 = vsyncpa %s562, 1
    %564 = vsyncpa [#allocation7], 1
    %565 = vsyncpa [#allocation5], 1
    %s566 = scalar_lea.sflag [#allocation5], 1
    %567 = vsyncpa %s566, 1

</llo_original>
